<compile_context>
chip_gen: v7x
topology: tpu7x:2x2x1
jax: 0.10.0
libtpu: 0.0.40
codegen_flags: <defaults>
</compile_context>

<pallas_src>
import jax
import jax.numpy as jnp
from jax import lax
from jax.experimental import pallas as pl
from jax.experimental.pallas import tpu as pltpu


# ----------------------------------------------------------------------------- helpers
def _round_up(x, m):
    return (x + m - 1) // m * m


def _sigmoid(x):
    # Numerically safe sigmoid on the EUP: tanh never overflows (unlike exp(-x)),
    # and tanh occupies the EUP slot, keeping the VALU free for the wide fc4 bias add.
    return 0.5 * (jnp.tanh(0.5 * x) + 1.0)


# ----------------------------------------------------------------------------- kernel
def sae_kernel(x_ref, w1t_ref, b1_ref, w2_ref, b2_ref, w3_ref, b3_ref,
               w4_ref, b4_ref, o_ref):
    # x arrives as f32 (no extra HBM pass in the wrapper); cast to bf16 in VMEM.
    x = x_ref[...].astype(jnp.bfloat16)                                   # (tb, M)

    # fc1: contract the movie axis of x against the lane-dense transposed weight
    # (20, M).  bf16 x bf16 -> f32 accumulate on the MXU; bias/sigmoid in f32.
    h1 = lax.dot_general(x, w1t_ref[...],
                         dimension_numbers=(((1,), (1,)), ((), ())),
                         preferred_element_type=jnp.float32) + b1_ref[...]  # (tb, 20)
    h1 = _sigmoid(h1)

    # fc2 / fc3 are tiny; stay f32 end-to-end.
    h2 = _sigmoid(jnp.dot(h1, w2_ref[...],
                          preferred_element_type=jnp.float32) + b2_ref[...])  # (tb, 10)
    h3 = _sigmoid(jnp.dot(h2, w3_ref[...],
                          preferred_element_type=jnp.float32) + b3_ref[...])  # (tb, 20)

    # fc4: bf16 x bf16 -> f32 accumulate, f32 bias, bf16 store (lane-width = M).
    y = jnp.dot(h3.astype(w4_ref.dtype), w4_ref[...],
                preferred_element_type=jnp.float32) + b4_ref[...]             # (tb, M)
    o_ref[...] = y.astype(o_ref.dtype)


# ----------------------------------------------------------------------------- wrapper
def sae_forward(x, params, *, out_dtype=jnp.bfloat16, tb=None):
    """x: (B, nb_movies) float32.  params: dict of (in,out) weights and (1,out) biases.

    Returns a (B, nb_movies) array in `out_dtype` (bf16 by default: this kernel is
    HBM-bandwidth-bound, and the output writeback is the largest traffic term).
    """
    B, M = x.shape
    f32, bf16 = jnp.float32, jnp.bfloat16

    # dtype/layout plan: the nb_movies-scaled weights go bf16; w1 is stored transposed
    # (20, M) so its HBM->VMEM DMA is lane-dense along M.  Biases and the tiny hidden
    # weights stay f32 so the elementwise math is f32 on every chip generation.
    w1t = jnp.transpose(params["w1"]).astype(bf16)   # (20, M)
    b1 = params["b1"].astype(f32)                    # (1, 20)
    w2 = params["w2"].astype(f32)                    # (20, 10)
    b2 = params["b2"].astype(f32)                    # (1, 10)
    w3 = params["w3"].astype(f32)                    # (10, 20)
    b3 = params["b3"].astype(f32)                    # (1, 20)
    w4 = params["w4"].astype(bf16)                   # (20, M)
    b4 = params["b4"].astype(f32)                    # (1, M)
    weights = (w1t, b1, w2, b2, w3, b3, w4, b4)

    # Generation-aware VMEM budget (v7x: 64 MiB per TensorCore; v5e/v6e: 128 MiB).
    try:
        vmem_cap = int(pltpu.get_tpu_info().vmem_capacity_bytes)
    except Exception:
        vmem_cap = 64 * 1024 * 1024          # conservative fallback (v7x per-TC)
    vmem_limit = int(min(vmem_cap * 3 // 4, 100 * 1024 * 1024))

    # Rough resident-weight VMEM estimate (bf16 big weights, sublane padded 20->32,
    # lanes padded to 128, 2 pipeline buffers each) + slack for the small f32 arrays.
    m128 = _round_up(M, 128)
    weight_vmem = 2 * 2 * (32 * m128 * 2) + 64 * 1024

    # Batch tile sized by bytes: single grid step when the whole batch fits
    # comfortably; otherwise ~4 MiB per buffered x slab (multiple of 8 rows).
    bytes_per_row = 4 * M + 2 * M            # f32 x in + bf16 out, per buffer
    if tb is None:
        if B * bytes_per_row + weight_vmem <= min(vmem_limit // 2, 24 * 1024 * 1024):
            tb = B
        else:
            tb = max(8, ((4 * 1024 * 1024) // (4 * M)) // 8 * 8)
            tb = min(tb, 1024)
            while tb > 8 and 2 * tb * bytes_per_row + weight_vmem > vmem_limit:
                tb //= 2
            tb = max(8, (tb // 8) * 8)
    else:
        tb = min(tb, B)
        if tb < B:
            tb = max(8, (tb // 8) * 8)
    grid = (pl.cdiv(B, tb),)

    # Advisory cost model: fc1 + fc4 dominate; traffic is x (f32) + out (bf16) + bf16 weights.
    flops = 2 * B * (M * 20 + 20 * 10 + 10 * 20 + 20 * M)
    transc = B * (20 + 10 + 20)
    bytes_accessed = (B * M * 4 + B * M * 2 + 2 * (20 * M * 2)
                      + 4 * (20 * 10 + 10 * 20 + 20 + 10 + 20 + M))
    cost = pl.CostEstimate(flops=int(flops), transcendentals=int(transc),
                           bytes_accessed=int(bytes_accessed))

    in_specs = [pl.BlockSpec((tb, M), lambda i: (i, 0))]          # x: tiled on batch only
    in_specs += [pl.BlockSpec(w.shape, lambda i: (0, 0)) for w in weights]

    out = pl.pallas_call(
        sae_kernel,
        out_shape=jax.ShapeDtypeStruct((B, M), out_dtype),
        grid_spec=pltpu.PrefetchScalarGridSpec(
            num_scalar_prefetch=0,
            grid=grid,
            in_specs=in_specs,
            out_specs=pl.BlockSpec((tb, M), lambda i: (i, 0)),
        ),
        compiler_params=pltpu.CompilerParams(
            dimension_semantics=("parallel",),
            vmem_limit_bytes=vmem_limit),
        cost_estimate=cost,
    )(x.astype(f32), *weights)

    return out


# ----------------------------------------------------------------------------- init/ref
def init_params(key, nb_movies):
    """Deterministic init mimicking PyTorch nn.Linear default (U[-1/sqrt(fan_in), +])."""
    dims = [(nb_movies, 20), (20, 10), (10, 20), (20, nb_movies)]
    params = {}
    keys = jax.random.split(key, 2 * len(dims))
    for idx, (fan_in, fan_out) in enumerate(dims):
        bound = 1.0 / jnp.sqrt(jnp.float32(fan_in))
        w = jax.random.uniform(keys[2 * idx], (fan_in, fan_out),
                               minval=-bound, maxval=bound, dtype=jnp.float32)
        b = jax.random.uniform(keys[2 * idx + 1], (1, fan_out),
                               minval=-bound, maxval=bound, dtype=jnp.float32)
        params[f"w{idx + 1}"] = w
        params[f"b{idx + 1}"] = b
    return params


def sae_reference(x, params):
    """Pure-JAX reference mirroring the kernel's bf16 casts on x, w1, w4, h3."""
    xb = x.astype(jnp.bfloat16).astype(jnp.float32)
    w1 = params["w1"].astype(jnp.bfloat16).astype(jnp.float32)
    w4 = params["w4"].astype(jnp.bfloat16).astype(jnp.float32)
    h = jax.nn.sigmoid(xb @ w1 + params["b1"])
    h = jax.nn.sigmoid(h @ params["w2"] + params["b2"])
    h = jax.nn.sigmoid(h @ params["w3"] + params["b3"])
    h = h.astype(jnp.bfloat16).astype(jnp.float32)
    return h @ w4 + params["b4"]


if __name__ == "__main__":
    # nb_movies deliberately NOT a multiple of 128 (exercises full-width lane blocks),
    # batch small (exercises the grid=(1,) / no-padding fast path).
    NB_MOVIES = 200
    BATCH = 24

    key = jax.random.PRNGKey(0)
    kx, kp = jax.random.split(key)
    x = jax.random.uniform(kx, (BATCH, NB_MOVIES), minval=0.0, maxval=5.0,
                           dtype=jnp.float32)
    params = init_params(kp, NB_MOVIES)

    out = sae_forward(x, params)
    out = jax.block_until_ready(out)

    ref = sae_reference(x, params)
    assert out.shape == (BATCH, NB_MOVIES)
    # bf16 output + bf16 MXU inputs -> loosened tolerance vs. pure-f32 math.
    err = jnp.max(jnp.abs(out.astype(jnp.float32) - ref))
    assert jnp.allclose(out.astype(jnp.float32), ref, atol=2e-2, rtol=2e-2), float(err)

    print("KERNEL_OK")
</pallas_src>

<mosaic_0001>
module attributes {stable_mosaic.version = 11 : i64} {
  func.func @sae_kernel(%arg0: i32, %arg1: memref<24x200xf32, #tpu.memory_space<vmem>>, %arg2: memref<20x200xbf16, #tpu.memory_space<vmem>>, %arg3: memref<1x20xf32, #tpu.memory_space<vmem>>, %arg4: memref<20x10xf32, #tpu.memory_space<vmem>>, %arg5: memref<1x10xf32, #tpu.memory_space<vmem>>, %arg6: memref<10x20xf32, #tpu.memory_space<vmem>>, %arg7: memref<1x20xf32, #tpu.memory_space<vmem>>, %arg8: memref<20x200xbf16, #tpu.memory_space<vmem>>, %arg9: memref<1x200xf32, #tpu.memory_space<vmem>>, %arg10: memref<24x200xbf16, #tpu.memory_space<vmem>>) attributes {dimension_semantics = [#tpu.dimension_semantics<parallel>], iteration_bounds = array<i64: 1>, scalar_prefetch = 0 : i64, scratch_operands = 0 : i64, tpu.core_type = #tpu.core_type<tc>, window_params = [{transform_indices = @transform_0, window_bounds = array<i64: 24, 200>}, {pipeline_mode = #tpu.pipeline_mode<synchronous>, transform_indices = @transform_1, window_bounds = array<i64: 20, 200>}, {pipeline_mode = #tpu.pipeline_mode<synchronous>, transform_indices = @transform_2, window_bounds = array<i64: 1, 20>}, {pipeline_mode = #tpu.pipeline_mode<synchronous>, transform_indices = @transform_3, window_bounds = array<i64: 20, 10>}, {pipeline_mode = #tpu.pipeline_mode<synchronous>, transform_indices = @transform_4, window_bounds = array<i64: 1, 10>}, {pipeline_mode = #tpu.pipeline_mode<synchronous>, transform_indices = @transform_5, window_bounds = array<i64: 10, 20>}, {pipeline_mode = #tpu.pipeline_mode<synchronous>, transform_indices = @transform_6, window_bounds = array<i64: 1, 20>}, {pipeline_mode = #tpu.pipeline_mode<synchronous>, transform_indices = @transform_7, window_bounds = array<i64: 20, 200>}, {pipeline_mode = #tpu.pipeline_mode<synchronous>, transform_indices = @transform_8, window_bounds = array<i64: 1, 200>}, {transform_indices = @transform_9, window_bounds = array<i64: 24, 200>}]} {
    %c0 = arith.constant 0 : index
    %c0_0 = arith.constant 0 : index
    %0 = vector.load %arg1[%c0, %c0_0] : memref<24x200xf32, #tpu.memory_space<vmem>>, vector<24x200xf32>
    %1 = arith.truncf %0 : vector<24x200xf32> to vector<24x200xbf16>
    %c0_1 = arith.constant 0 : index
    %c0_2 = arith.constant 0 : index
    %2 = vector.load %arg2[%c0_1, %c0_2] : memref<20x200xbf16, #tpu.memory_space<vmem>>, vector<20x200xbf16>
    %cst = arith.constant dense<0.000000e+00> : vector<24x20xf32>
    %3 = tpu.matmul %1, %2, %cst {dimension_numbers = #tpu.dot_dimension_numbers<[1], [1], [0], [0], [0, 0, 1, 0], [], []>} : vector<24x200xbf16>, vector<20x200xbf16>, vector<24x20xf32> -> vector<24x20xf32>
    %c0_3 = arith.constant 0 : index
    %c0_4 = arith.constant 0 : index
    %4 = vector.load %arg3[%c0_3, %c0_4] : memref<1x20xf32, #tpu.memory_space<vmem>>, vector<1x20xf32>
    %5 = vector.broadcast %4 : vector<1x20xf32> to vector<24x20xf32>
    %6 = arith.addf %3, %5 : vector<24x20xf32>
    %cst_5 = arith.constant 5.000000e-01 : f32
    %7 = vector.broadcast %cst_5 : f32 to vector<24x20xf32>
    %8 = arith.mulf %7, %6 : vector<24x20xf32>
    %9 = math.tanh %8 : vector<24x20xf32>
    %cst_6 = arith.constant 1.000000e+00 : f32
    %10 = vector.broadcast %cst_6 : f32 to vector<24x20xf32>
    %11 = arith.addf %9, %10 : vector<24x20xf32>
    %cst_7 = arith.constant 5.000000e-01 : f32
    %12 = vector.broadcast %cst_7 : f32 to vector<24x20xf32>
    %13 = arith.mulf %12, %11 : vector<24x20xf32>
    %c0_8 = arith.constant 0 : index
    %c0_9 = arith.constant 0 : index
    %14 = vector.load %arg4[%c0_8, %c0_9] : memref<20x10xf32, #tpu.memory_space<vmem>>, vector<20x10xf32>
    %cst_10 = arith.constant dense<0.000000e+00> : vector<24x10xf32>
    %15 = tpu.matmul %13, %14, %cst_10 {dimension_numbers = #tpu.dot_dimension_numbers<[1], [0], [0], [1], [0, 0, 1, 1], [], []>} : vector<24x20xf32>, vector<20x10xf32>, vector<24x10xf32> -> vector<24x10xf32>
    %c0_11 = arith.constant 0 : index
    %c0_12 = arith.constant 0 : index
    %16 = vector.load %arg5[%c0_11, %c0_12] : memref<1x10xf32, #tpu.memory_space<vmem>>, vector<1x10xf32>
    %17 = vector.broadcast %16 : vector<1x10xf32> to vector<24x10xf32>
    %18 = arith.addf %15, %17 : vector<24x10xf32>
    %cst_13 = arith.constant 5.000000e-01 : f32
    %19 = vector.broadcast %cst_13 : f32 to vector<24x10xf32>
    %20 = arith.mulf %19, %18 : vector<24x10xf32>
    %21 = math.tanh %20 : vector<24x10xf32>
    %cst_14 = arith.constant 1.000000e+00 : f32
    %22 = vector.broadcast %cst_14 : f32 to vector<24x10xf32>
    %23 = arith.addf %21, %22 : vector<24x10xf32>
    %cst_15 = arith.constant 5.000000e-01 : f32
    %24 = vector.broadcast %cst_15 : f32 to vector<24x10xf32>
    %25 = arith.mulf %24, %23 : vector<24x10xf32>
    %c0_16 = arith.constant 0 : index
    %c0_17 = arith.constant 0 : index
    %26 = vector.load %arg6[%c0_16, %c0_17] : memref<10x20xf32, #tpu.memory_space<vmem>>, vector<10x20xf32>
    %cst_18 = arith.constant dense<0.000000e+00> : vector<24x20xf32>
    %27 = tpu.matmul %25, %26, %cst_18 {dimension_numbers = #tpu.dot_dimension_numbers<[1], [0], [0], [1], [0, 0, 1, 1], [], []>} : vector<24x10xf32>, vector<10x20xf32>, vector<24x20xf32> -> vector<24x20xf32>
    %c0_19 = arith.constant 0 : index
    %c0_20 = arith.constant 0 : index
    %28 = vector.load %arg7[%c0_19, %c0_20] : memref<1x20xf32, #tpu.memory_space<vmem>>, vector<1x20xf32>
    %29 = vector.broadcast %28 : vector<1x20xf32> to vector<24x20xf32>
    %30 = arith.addf %27, %29 : vector<24x20xf32>
    %cst_21 = arith.constant 5.000000e-01 : f32
    %31 = vector.broadcast %cst_21 : f32 to vector<24x20xf32>
    %32 = arith.mulf %31, %30 : vector<24x20xf32>
    %33 = math.tanh %32 : vector<24x20xf32>
    %cst_22 = arith.constant 1.000000e+00 : f32
    %34 = vector.broadcast %cst_22 : f32 to vector<24x20xf32>
    %35 = arith.addf %33, %34 : vector<24x20xf32>
    %cst_23 = arith.constant 5.000000e-01 : f32
    %36 = vector.broadcast %cst_23 : f32 to vector<24x20xf32>
    %37 = arith.mulf %36, %35 : vector<24x20xf32>
    %38 = arith.truncf %37 : vector<24x20xf32> to vector<24x20xbf16>
    %c0_24 = arith.constant 0 : index
    %c0_25 = arith.constant 0 : index
    %39 = vector.load %arg8[%c0_24, %c0_25] : memref<20x200xbf16, #tpu.memory_space<vmem>>, vector<20x200xbf16>
    %cst_26 = arith.constant dense<0.000000e+00> : vector<24x200xf32>
    %40 = tpu.matmul %38, %39, %cst_26 {dimension_numbers = #tpu.dot_dimension_numbers<[1], [0], [0], [1], [0, 0, 1, 1], [], []>} : vector<24x20xbf16>, vector<20x200xbf16>, vector<24x200xf32> -> vector<24x200xf32>
    %c0_27 = arith.constant 0 : index
    %c0_28 = arith.constant 0 : index
    %41 = vector.load %arg9[%c0_27, %c0_28] : memref<1x200xf32, #tpu.memory_space<vmem>>, vector<1x200xf32>
    %42 = vector.broadcast %41 : vector<1x200xf32> to vector<24x200xf32>
    %43 = arith.addf %40, %42 : vector<24x200xf32>
    %44 = arith.truncf %43 : vector<24x200xf32> to vector<24x200xbf16>
    %c0_29 = arith.constant 0 : index
    %c0_30 = arith.constant 0 : index
    %45 = vector.load %arg10[%c0_29, %c0_30] : memref<24x200xbf16, #tpu.memory_space<vmem>>, vector<24x200xbf16>
    tpu.vector_store %arg10[%c0_29, %c0_30], %44 {strides = array<i32>} : memref<24x200xbf16, #tpu.memory_space<vmem>>, vector<24x200xbf16>,
    return
  }
  func.func @transform_0(%arg0: i32) -> (i32, i32) {
    %c0_i32 = arith.constant 0 : i32
    %c0_i32_0 = arith.constant 0 : i32
    return %arg0, %c0_i32 : i32, i32
  }
  func.func @transform_1(%arg0: i32) -> (i32, i32) {
    %c0_i32 = arith.constant 0 : i32
    %c0_i32_0 = arith.constant 0 : i32
    %c0_i32_1 = arith.constant 0 : i32
    return %c0_i32, %c0_i32_0 : i32, i32
  }
  func.func @transform_2(%arg0: i32) -> (i32, i32) {
    %c0_i32 = arith.constant 0 : i32
    %c0_i32_0 = arith.constant 0 : i32
    %c0_i32_1 = arith.constant 0 : i32
    return %c0_i32, %c0_i32_0 : i32, i32
  }
  func.func @transform_3(%arg0: i32) -> (i32, i32) {
    %c0_i32 = arith.constant 0 : i32
    %c0_i32_0 = arith.constant 0 : i32
    %c0_i32_1 = arith.constant 0 : i32
    return %c0_i32, %c0_i32_0 : i32, i32
  }
  func.func @transform_4(%arg0: i32) -> (i32, i32) {
    %c0_i32 = arith.constant 0 : i32
    %c0_i32_0 = arith.constant 0 : i32
    %c0_i32_1 = arith.constant 0 : i32
    return %c0_i32, %c0_i32_0 : i32, i32
  }
  func.func @transform_5(%arg0: i32) -> (i32, i32) {
    %c0_i32 = arith.constant 0 : i32
    %c0_i32_0 = arith.constant 0 : i32
    %c0_i32_1 = arith.constant 0 : i32
    return %c0_i32, %c0_i32_0 : i32, i32
  }
  func.func @transform_6(%arg0: i32) -> (i32, i32) {
    %c0_i32 = arith.constant 0 : i32
    %c0_i32_0 = arith.constant 0 : i32
    %c0_i32_1 = arith.constant 0 : i32
    return %c0_i32, %c0_i32_0 : i32, i32
  }
  func.func @transform_7(%arg0: i32) -> (i32, i32) {
    %c0_i32 = arith.constant 0 : i32
    %c0_i32_0 = arith.constant 0 : i32
    %c0_i32_1 = arith.constant 0 : i32
    return %c0_i32, %c0_i32_0 : i32, i32
  }
  func.func @transform_8(%arg0: i32) -> (i32, i32) {
    %c0_i32 = arith.constant 0 : i32
    %c0_i32_0 = arith.constant 0 : i32
    %c0_i32_1 = arith.constant 0 : i32
    return %c0_i32, %c0_i32_0 : i32, i32
  }
  func.func @transform_9(%arg0: i32) -> (i32, i32) {
    %c0_i32 = arith.constant 0 : i32
    %c0_i32_0 = arith.constant 0 : i32
    return %arg0, %c0_i32 : i32, i32
  }
}

</mosaic_0001>

<llo_original>
// kernel: tpu_custom_call.1
$region0: #{tpu_custom_call.1}
  #allocation0 [shape = 'u32[]', space=smem, size = 0x4, offset = 0x4, fixed_abs, tag = 'smem constant byte address 0x4 - core index']
  #allocation1 [shape = 'u32[144,128]{1,0:T(1,128)}', space=vmem, size = 0x12000, scoped, tag = 'internal scratch']
  %s0 = inlined_call_operand.hbm [shape: f32[24,200], index: 0, kind: input, shape index: {}]
  %s1 = inlined_call_operand.vmem [shape: bf16[20,200], index: 1, kind: input, shape index: {}]
  %s2 = inlined_call_operand.vmem [shape: f32[1,20], index: 2, kind: input, shape index: {}]
  %s3 = inlined_call_operand.vmem [shape: f32[20,10], index: 3, kind: input, shape index: {}]
  %s4 = inlined_call_operand.vmem [shape: f32[1,10], index: 4, kind: input, shape index: {}]
  %s5 = inlined_call_operand.hbm [shape: f32[10,20], index: 5, kind: input, shape index: {}]
  %s6 = inlined_call_operand.vmem [shape: f32[1,20], index: 6, kind: input, shape index: {}]
  %s7 = inlined_call_operand.vmem [shape: bf16[20,200], index: 7, kind: input, shape index: {}]
  %s8 = inlined_call_operand.vmem [shape: f32[1,200], index: 8, kind: input, shape index: {}]
  %s9 = inlined_call_operand.hbm [shape: bf16[24,200], index: 9, kind: output, shape index: {}]
  %s10 = sld [smem:[#allocation0]]
  $region54: #{tpu_custom_call.1} parent=0
    _
  %s12 = ssub.s32 1, %s10
  %s13 = scalar_select 0, %s12, %s10
  $region1: #{tpu_custom_call.1} parent=0
    #allocation2 [shape = 'u8[24576]{0}', space=vmem, size = 0x6000, scoped, tag = 'input window, operand 0, single buffered']
    #allocation3 [shape = 's32[1]{0}', space=sflag, size = 0x4, scoped, tag = 'scoped memory for tpu_custom_call.1']
    #allocation4 [shape = 's32[1]{0}', space=sflag, size = 0x4, scoped, tag = 'scoped memory for tpu_custom_call.1']
    #allocation5 [shape = 'u8[8192]{0}', space=vmem, size = 0x2000, scoped, tag = 'input window, operand 5, single buffered']
    #allocation6 [shape = 's32[1]{0}', space=sflag, size = 0x4, scoped, tag = 'scoped memory for tpu_custom_call.1']
    #allocation7 [shape = 'u8[12288]{0}', space=vmem, size = 0x3000, scoped, tag = 'output window, operand 0, single buffered']
    %14 = vsyncpa [#allocation3], 0
    %15 = vsyncpa [#allocation6], 0
    %16 = vsyncpa [#allocation4], 0
    // Predicated region
    $region2: #{tpu_custom_call.1} parent=1 // pred_check
      _
    $region3: #{tpu_custom_call.1} parent=1 // pred_check_branch
      %18 = sbr.rel (0) target = $region5
    $region4: #{tpu_custom_call.1} parent=1 // pred_region
      %s20 = ssub.s32 768, 768
      %21 = vsyncadd [#allocation3], %s20
      %s22 = sshll.u32 [#allocation2], 4
      %s23 = int_to_ptr.vmem [resolvable:$true] %s22
      %28 = dma.hbm_to_vmem [thread:$0]  %s0, 768, %s23, [#allocation3], 256, 256, 16
    $region5: #{tpu_custom_call.1} parent=1 // pred_fallthru
      _
    // Predicated region
    $region6: #{tpu_custom_call.1} parent=1 // pred_check
      _
    $region7: #{tpu_custom_call.1} parent=1 // pred_check_branch
      %30 = sbr.rel (0) target = $region9
    $region8: #{tpu_custom_call.1} parent=1 // pred_region
      _
    $region9: #{tpu_custom_call.1} parent=1 // pred_fallthru
      _
    // Predicated region
    $region10: #{tpu_custom_call.1} parent=1 // pred_check
      _
    $region11: #{tpu_custom_call.1} parent=1 // pred_check_branch
      %32 = sbr.rel (0) target = $region13
    $region12: #{tpu_custom_call.1} parent=1 // pred_region
      _
    $region13: #{tpu_custom_call.1} parent=1 // pred_fallthru
      _
    // Predicated region
    $region14: #{tpu_custom_call.1} parent=1 // pred_check
      _
    $region15: #{tpu_custom_call.1} parent=1 // pred_check_branch
      %34 = sbr.rel (0) target = $region17
    $region16: #{tpu_custom_call.1} parent=1 // pred_region
      _
    $region17: #{tpu_custom_call.1} parent=1 // pred_fallthru
      _
    // Predicated region
    $region18: #{tpu_custom_call.1} parent=1 // pred_check
      _
    $region19: #{tpu_custom_call.1} parent=1 // pred_check_branch
      %36 = sbr.rel (0) target = $region21
    $region20: #{tpu_custom_call.1} parent=1 // pred_region
      _
    $region21: #{tpu_custom_call.1} parent=1 // pred_fallthru
      _
    // Predicated region
    $region22: #{tpu_custom_call.1} parent=1 // pred_check
      _
    $region23: #{tpu_custom_call.1} parent=1 // pred_check_branch
      %38 = sbr.rel (0) target = $region25
    $region24: #{tpu_custom_call.1} parent=1 // pred_region
      %s40 = ssub.s32 256, 256
      %41 = vsyncadd [#allocation6], %s40
      %s42 = sshll.u32 [#allocation5], 4
      %s43 = int_to_ptr.vmem [resolvable:$true] %s42
      %48 = dma.hbm_to_vmem [thread:$0]  %s5, 256, %s43, [#allocation6], 128, 128, 8
    $region25: #{tpu_custom_call.1} parent=1 // pred_fallthru
      _
    // Predicated region
    $region26: #{tpu_custom_call.1} parent=1 // pred_check
      _
    $region27: #{tpu_custom_call.1} parent=1 // pred_check_branch
      %50 = sbr.rel (0) target = $region29
    $region28: #{tpu_custom_call.1} parent=1 // pred_region
      _
    $region29: #{tpu_custom_call.1} parent=1 // pred_fallthru
      _
    // Predicated region
    $region30: #{tpu_custom_call.1} parent=1 // pred_check
      _
    $region31: #{tpu_custom_call.1} parent=1 // pred_check_branch
      %52 = sbr.rel (0) target = $region33
    $region32: #{tpu_custom_call.1} parent=1 // pred_region
      _
    $region33: #{tpu_custom_call.1} parent=1 // pred_fallthru
      _
    // Predicated region
    $region34: #{tpu_custom_call.1} parent=1 // pred_check
      _
    $region35: #{tpu_custom_call.1} parent=1 // pred_check_branch
      %54 = sbr.rel (0) target = $region37
    $region36: #{tpu_custom_call.1} parent=1 // pred_region
      _
    $region37: #{tpu_custom_call.1} parent=1 // pred_fallthru
      _
    // Predicated region
    $region38: #{tpu_custom_call.1} parent=1 // pred_check
      _
    $region39: #{tpu_custom_call.1} parent=1 // pred_check_branch
      %56 = sbr.rel (0) target = $region41
    $region40: #{tpu_custom_call.1} parent=1 // pred_region
      %57 = dma.done [#allocation3], 768
    $region41: #{tpu_custom_call.1} parent=1 // pred_fallthru
      _
    // Predicated region
    $region42: #{tpu_custom_call.1} parent=1 // pred_check
      _
    $region43: #{tpu_custom_call.1} parent=1 // pred_check_branch
      %59 = sbr.rel (0) target = $region45
    $region44: #{tpu_custom_call.1} parent=1 // pred_region
      %60 = dma.done [#allocation6], 256
    $region45: #{tpu_custom_call.1} parent=1 // pred_fallthru
      _
    %v62 = vld [vmem:[#allocation2] sm:$0xff]
    %v63 = vld [vmem:[#allocation2 + $0x8] sm:$0xff]
    %v64 = vld [vmem:[#allocation2 + $0x10] sm:$0xff]
    %v65 = vld [vmem:[#allocation2 + $0x18] sm:$0xff]
    %v66 = vld [vmem:[#allocation2 + $0x20] sm:$0xff]
    %v67 = vld [vmem:[#allocation2 + $0x28] sm:$0xff]
    %v68 = vpack.c.bf16 %v64, %v62
    %v69 = vpack.c.bf16 %v65, %v63
    %v70 = vpack.c.bf16 %v66, %v66
    %v71 = vpack.c.bf16 %v67, %v67
    %v72 = vld [vmem:[%s1] sm:$0xff]
    %v73 = vld [vmem:[%s1 + $0x8] sm:$0xff]
    %v74 = vld [vmem:[%s1 + $0x10] sm:$0x33]
    %v75 = vld [vmem:[%s2] sm:$0x1]
    %v77 = vlaneseq
    %v78 = vshrl.u32 %v77, 7
    %v79 = vsub.s32 0, %v78
    %v80 = vrot.slane %v75, %v79
    %v85 = vunpack.c.l.b16 %v72
    %v86 = vunpack.c.h.b16 %v72
    %v87 = vunpack.c.l.b16 %v73
    %v88 = vunpack.c.h.b16 %v73
    %v89 = vunpack.c.l.b16 %v74
    %v90 = vunpack.c.h.b16 %v74
    %v91 = vpack.c.b16 %v87, %v85
    %v92 = vpack.c.b16 %v88, %v86
    %v93 = vpack.c.b16 %v89, %v89
    %v94 = vpack.c.b16 %v90, %v90
    %vm97 = vcmask 588800
    %v99 = vsel %vm97, %v69, 0
    %v102 = vsel %vm97, %v71, 0
    %v105 = vsel %vm97, %v92, 0
    %v108 = vsel %vm97, %v94, 0
    %110 = vmatprep.subr.bf16.mxu0 %v105
    %111 = vmatpush1.bf16.xpose.msra.mxu0 %v91
    %112 = vmatprep.subr.bf16.mxu0 %v108
    %113 = vmatpush1.bf16.xpose.msra.mxu0 %v93
    %114 = vmatprep.subr.bf16.mxu0 0
    %115 = vmatpush1.bf16.xpose.msra.mxu0 0
    %116 = vmatprep.subr.bf16.mxu0 0
    %117 = vmatpush1.bf16.xpose.msra.mxu0 0
    %118 = vmatprep.subr.bf16.mxu0 0
    %119 = vmatpush1.bf16.xpose.msra.mxu0 0
    %120 = vmatprep.subr.bf16.mxu0 0
    %121 = vmatpush1.bf16.xpose.msra.mxu0 0
    %122 = vmatprep.subr.bf16.mxu0 0
    %123 = vmatpush1.bf16.xpose.msra.mxu0 0
    %124 = vmatprep.subr.bf16.mxu0 0
    %125 = vmatpush1.bf16.xpose.msra.mxu0 0
    %126 = vmatprep.subr.bf16.mxu0 0
    %127 = vmatpush1.bf16.xpose.msra.mxu0 0
    %128 = vmatprep.subr.bf16.mxu0 0
    %129 = vmatpush1.bf16.xpose.msra.mxu0 0
    %130 = vmatprep.subr.bf16.mxu0 0
    %131 = vmatpush1.bf16.xpose.msra.mxu0 0
    %132 = vmatprep.subr.bf16.mxu0 0
    %133 = vmatpush1.bf16.xpose.msra.mxu0 0
    %134 = vmatprep.subr.bf16.mxu0 0
    %135 = vmatpush1.bf16.xpose.msra.mxu0 0
    %136 = vmatprep.subr.bf16.mxu0 0
    %137 = vmatpush1.bf16.xpose.msra.mxu0 0
    %138 = vmatprep.subr.bf16.mxu0 0
    %139 = vmatpush1.bf16.xpose.msra.mxu0 0
    %140 = vmatprep.subr.bf16.mxu0 0
    %141 = vmatpush1.bf16.xpose.msra.mxu0 0
    %142 = vmatprep.mubr.bf16.mxu0 %v99
    %143 = vmatmul.mubr.bf16.gmra.mrb[0].mxu0 %v68
    %v144 = vpop.f32.mrb[0].mxu0
    %v145 = vadd.f32 %v80, %v144
    %v146 = vpop.f32.mrb[0].mxu0
    %v147 = vpop.f32.mrb[0].mxu0
    %v148 = vadd.f32 %v80, %v147
    %v149 = vpop.f32.mrb[0].mxu0
    %150 = vmatprep.mubr.bf16.mxu0 %v102
    %151 = vmatmul.mubr.bf16.gmra.mrb[0].mxu0 %v70
    %v152 = vpop.f32.mrb[0].mxu0
    %v153 = vadd.f32 %v80, %v152
    %v154 = vpop.f32.mrb[0].mxu0
    %v155 = vpop.f32.mrb[0].mxu0
    %v156 = vpop.f32.mrb[0].mxu0
    %157 = vdwg.mxu0
    %v158 = vmul.f32 %v145, 0.5
    %v159 = vmul.f32 %v148, 0.5
    %v160 = vmul.f32 %v153, 0.5
    %v161 = vtanh.pop %v158
    %v162 = vtanh.pop %v159
    %v163 = vtanh.pop %v160
    %v164 = vadd.f32 %v161, 1.0
    %v165 = vadd.f32 %v162, 1.0
    %v166 = vadd.f32 %v163, 1.0
    %v167 = vmul.f32 %v164, 0.5
    %v168 = vmul.f32 %v165, 0.5
    %v169 = vmul.f32 %v166, 0.5
    %v170 = vld [vmem:[%s3] sm:$0xff]
    %v171 = vld [vmem:[%s3 + $0x8] sm:$0xff]
    %v172 = vld [vmem:[%s3 + $0x10] sm:$0xf]
    %v173 = vld [vmem:[%s4] sm:$0x1]
    %v175 = vlaneseq
    %v176 = vshrl.u32 %v175, 7
    %v177 = vsub.s32 0, %v176
    %v178 = vrot.slane %v173, %v177
    %vm180 = vcmask 162816
    %v182 = vsel %vm180, %v167, 0
    %v185 = vsel %vm180, %v168, 0
    %v188 = vsel %vm180, %v169, 0
    %vm190 = vcmask 1043456
    %v192 = vsel %vm190, %v172, 0
    %194 = vmatprep.subr.mxu0 0.0
    %195 = vmatpush1.msra.mxu0 %v170
    %196 = vmatprep.subr.mxu0 0.0
    %197 = vmatpush1.msra.mxu0 %v171
    %198 = vmatprep.subr.mxu0 0.0
    %199 = vmatpush1.msra.mxu0 %v192
    %200 = vmatprep.subr.mxu0 0.0
    %201 = vmatpush1.msra.mxu0 0.0
    %202 = vmatprep.subr.mxu0 0.0
    %203 = vmatpush1.msra.mxu0 0.0
    %204 = vmatprep.subr.mxu0 0.0
    %205 = vmatpush1.msra.mxu0 0.0
    %206 = vmatprep.subr.mxu0 0.0
    %207 = vmatpush1.msra.mxu0 0.0
    %208 = vmatprep.subr.mxu0 0.0
    %209 = vmatpush1.msra.mxu0 0.0
    %210 = vmatprep.subr.mxu0 0.0
    %211 = vmatpush1.msra.mxu0 0.0
    %212 = vmatprep.subr.mxu0 0.0
    %213 = vmatpush1.msra.mxu0 0.0
    %214 = vmatprep.subr.mxu0 0.0
    %215 = vmatpush1.msra.mxu0 0.0
    %216 = vmatprep.subr.mxu0 0.0
    %217 = vmatpush1.msra.mxu0 0.0
    %218 = vmatprep.subr.mxu0 0.0
    %219 = vmatpush1.msra.mxu0 0.0
    %220 = vmatprep.subr.mxu0 0.0
    %221 = vmatpush1.msra.mxu0 0.0
    %222 = vmatprep.subr.mxu0 0.0
    %223 = vmatpush1.msra.mxu0 0.0
    %224 = vmatprep.subr.mxu0 0.0
    %225 = vmatpush1.msra.mxu0 0.0
    %226 = vmatprep.subr.mxu0 0.0
    %227 = vmatpush1.msra.mxu0 0.0
    %228 = vmatprep.subr.mxu0 0.0
    %229 = vmatpush1.msra.mxu0 0.0
    %230 = vmatprep.subr.mxu0 0.0
    %231 = vmatpush1.msra.mxu0 0.0
    %232 = vmatprep.subr.mxu0 0.0
    %233 = vmatpush1.msra.mxu0 0.0
    %234 = vmatprep.subr.mxu0 0.0
    %235 = vmatpush1.msra.mxu0 0.0
    %236 = vmatprep.subr.mxu0 0.0
    %237 = vmatpush1.msra.mxu0 0.0
    %238 = vmatprep.subr.mxu0 0.0
    %239 = vmatpush1.msra.mxu0 0.0
    %240 = vmatprep.subr.mxu0 0.0
    %241 = vmatpush1.msra.mxu0 0.0
    %242 = vmatprep.subr.mxu0 0.0
    %243 = vmatpush1.msra.mxu0 0.0
    %244 = vmatprep.subr.mxu0 0.0
    %245 = vmatpush1.msra.mxu0 0.0
    %246 = vmatprep.subr.mxu0 0.0
    %247 = vmatpush1.msra.mxu0 0.0
    %248 = vmatprep.subr.mxu0 0.0
    %249 = vmatpush1.msra.mxu0 0.0
    %250 = vmatprep.subr.mxu0 0.0
    %251 = vmatpush1.msra.mxu0 0.0
    %252 = vmatprep.subr.mxu0 0.0
    %253 = vmatpush1.msra.mxu0 0.0
    %254 = vmatprep.subr.mxu0 0.0
    %255 = vmatpush1.msra.mxu0 0.0
    %256 = vmatprep.subr.mxu0 0.0
    %257 = vmatpush1.msra.mxu0 0.0
    %258 = vmatprep.mubr.f32.mxu0 0.0
    %259 = vmatmul.mubr.f32.gmra.mrb[0].mxu0 %v182
    %v260 = vpop.f32.mrb[0].mxu0
    %v261 = vadd.f32 %v178, %v260
    %v262 = vpop.f32.mrb[0].mxu0
    %263 = vmatprep.mubr.f32.mxu0 0.0
    %264 = vmatmul.mubr.f32.gmra.mrb[0].mxu0 %v185
    %v265 = vpop.f32.mrb[0].mxu0
    %v266 = vadd.f32 %v178, %v265
    %v267 = vpop.f32.mrb[0].mxu0
    %268 = vmatprep.mubr.f32.mxu0 0.0
    %269 = vmatmul.mubr.f32.gmra.mrb[0].mxu0 %v188
    %v270 = vpop.f32.mrb[0].mxu0
    %v271 = vadd.f32 %v178, %v270
    %v272 = vpop.f32.mrb[0].mxu0
    %273 = vdwg.mxu0
    %v274 = vmul.f32 %v261, 0.5
    %v275 = vmul.f32 %v266, 0.5
    %v276 = vmul.f32 %v271, 0.5
    %v277 = vtanh.pop %v274
    %v278 = vtanh.pop %v275
    %v279 = vtanh.pop %v276
    %v280 = vadd.f32 %v277, 1.0
    %v281 = vadd.f32 %v278, 1.0
    %v282 = vadd.f32 %v279, 1.0
    %v283 = vmul.f32 %v280, 0.5
    %v284 = vmul.f32 %v281, 0.5
    %v285 = vmul.f32 %v282, 0.5
    %v286 = vld [vmem:[#allocation5] sm:$0xff]
    %v287 = vld [vmem:[#allocation5 + $0x8] sm:$0x3]
    %v288 = vld [vmem:[%s6] sm:$0x1]
    %v290 = vlaneseq
    %v291 = vshrl.u32 %v290, 7
    %v292 = vsub.s32 0, %v291
    %v293 = vrot.slane %v288, %v292
    %vm295 = vcmask 80896
    %v297 = vsel %vm295, %v283, 0
    %v300 = vsel %vm295, %v284, 0
    %v303 = vsel %vm295, %v285, 0
    %vm305 = vcmask 1041408
    %v307 = vsel %vm305, %v287, 0
    %309 = vmatprep.subr.mxu0 0.0
    %310 = vmatpush1.msra.mxu0 %v286
    %311 = vmatprep.subr.mxu0 0.0
    %312 = vmatpush1.msra.mxu0 %v307
    %313 = vmatprep.subr.mxu0 0.0
    %314 = vmatpush1.msra.mxu0 0.0
    %315 = vmatprep.subr.mxu0 0.0
    %316 = vmatpush1.msra.mxu0 0.0
    %317 = vmatprep.subr.mxu0 0.0
    %318 = vmatpush1.msra.mxu0 0.0
    %319 = vmatprep.subr.mxu0 0.0
    %320 = vmatpush1.msra.mxu0 0.0
    %321 = vmatprep.subr.mxu0 0.0
    %322 = vmatpush1.msra.mxu0 0.0
    %323 = vmatprep.subr.mxu0 0.0
    %324 = vmatpush1.msra.mxu0 0.0
    %325 = vmatprep.subr.mxu0 0.0
    %326 = vmatpush1.msra.mxu0 0.0
    %327 = vmatprep.subr.mxu0 0.0
    %328 = vmatpush1.msra.mxu0 0.0
    %329 = vmatprep.subr.mxu0 0.0
    %330 = vmatpush1.msra.mxu0 0.0
    %331 = vmatprep.subr.mxu0 0.0
    %332 = vmatpush1.msra.mxu0 0.0
    %333 = vmatprep.subr.mxu0 0.0
    %334 = vmatpush1.msra.mxu0 0.0
    %335 = vmatprep.subr.mxu0 0.0
    %336 = vmatpush1.msra.mxu0 0.0
    %337 = vmatprep.subr.mxu0 0.0
    %338 = vmatpush1.msra.mxu0 0.0
    %339 = vmatprep.subr.mxu0 0.0
    %340 = vmatpush1.msra.mxu0 0.0
    %341 = vmatprep.subr.mxu0 0.0
    %342 = vmatpush1.msra.mxu0 0.0
    %343 = vmatprep.subr.mxu0 0.0
    %344 = vmatpush1.msra.mxu0 0.0
    %345 = vmatprep.subr.mxu0 0.0
    %346 = vmatpush1.msra.mxu0 0.0
    %347 = vmatprep.subr.mxu0 0.0
    %348 = vmatpush1.msra.mxu0 0.0
    %349 = vmatprep.subr.mxu0 0.0
    %350 = vmatpush1.msra.mxu0 0.0
    %351 = vmatprep.subr.mxu0 0.0
    %352 = vmatpush1.msra.mxu0 0.0
    %353 = vmatprep.subr.mxu0 0.0
    %354 = vmatpush1.msra.mxu0 0.0
    %355 = vmatprep.subr.mxu0 0.0
    %356 = vmatpush1.msra.mxu0 0.0
    %357 = vmatprep.subr.mxu0 0.0
    %358 = vmatpush1.msra.mxu0 0.0
    %359 = vmatprep.subr.mxu0 0.0
    %360 = vmatpush1.msra.mxu0 0.0
    %361 = vmatprep.subr.mxu0 0.0
    %362 = vmatpush1.msra.mxu0 0.0
    %363 = vmatprep.subr.mxu0 0.0
    %364 = vmatpush1.msra.mxu0 0.0
    %365 = vmatprep.subr.mxu0 0.0
    %366 = vmatpush1.msra.mxu0 0.0
    %367 = vmatprep.subr.mxu0 0.0
    %368 = vmatpush1.msra.mxu0 0.0
    %369 = vmatprep.subr.mxu0 0.0
    %370 = vmatpush1.msra.mxu0 0.0
    %371 = vmatprep.subr.mxu0 0.0
    %372 = vmatpush1.msra.mxu0 0.0
    %373 = vmatprep.mubr.f32.mxu0 0.0
    %374 = vmatmul.mubr.f32.gmra.mrb[0].mxu0 %v297
    %v375 = vpop.f32.mrb[0].mxu0
    %v376 = vadd.f32 %v293, %v375
    %v377 = vpop.f32.mrb[0].mxu0
    %378 = vmatprep.mubr.f32.mxu0 0.0
    %379 = vmatmul.mubr.f32.gmra.mrb[0].mxu0 %v300
    %v380 = vpop.f32.mrb[0].mxu0
    %v381 = vadd.f32 %v293, %v380
    %v382 = vpop.f32.mrb[0].mxu0
    %383 = vmatprep.mubr.f32.mxu0 0.0
    %384 = vmatmul.mubr.f32.gmra.mrb[0].mxu0 %v303
    %v385 = vpop.f32.mrb[0].mxu0
    %v386 = vadd.f32 %v293, %v385
    %v387 = vpop.f32.mrb[0].mxu0
    %388 = vdwg.mxu0
    %v389 = vmul.f32 %v376, 0.5
    %v390 = vmul.f32 %v381, 0.5
    %v391 = vmul.f32 %v386, 0.5
    %v392 = vtanh.pop %v389
    %v393 = vtanh.pop %v390
    %v394 = vtanh.pop %v391
    %v395 = vadd.f32 %v392, 1.0
    %v396 = vadd.f32 %v393, 1.0
    %v397 = vadd.f32 %v394, 1.0
    %v398 = vmul.f32 %v395, 0.5
    %v399 = vmul.f32 %v396, 0.5
    %v400 = vmul.f32 %v397, 0.5
    %v401 = vpack.c.bf16 %v399, %v398
    %v402 = vpack.c.bf16 %v400, %v400
    %v403 = vld [vmem:[%s7] sm:$0xff]
    %v404 = vld [vmem:[%s7 + $0x8] sm:$0xff]
    %v405 = vld [vmem:[%s7 + $0x10] sm:$0x33]
    %v406 = vld [vmem:[%s8] sm:$0x3]
    %v408 = vlaneseq
    %v409 = vshrl.u32 %v408, 7
    %v410 = vsub.s32 0, %v409
    %v411 = vrot.slane %v406, %v410
    %v412 = vlaneseq
    %v413 = vshrl.u32 %v412, 7
    %v414 = vsub.s32 1, %v413
    %v415 = vrot.slane %v406, %v414
    %v421 = vunpack.c.l.b16 %v403
    %v422 = vunpack.c.h.b16 %v403
    %v423 = vunpack.c.l.b16 %v404
    %v424 = vunpack.c.h.b16 %v404
    %v425 = vunpack.c.l.b16 %v405
    %v426 = vunpack.c.h.b16 %v405
    %v427 = vpack.c.b16 %v423, %v421
    %v428 = vpack.c.b16 %v424, %v422
    %v429 = vpack.c.b16 %v425, %v425
    %v430 = vpack.c.b16 %v426, %v426
    %v434 = vsel %vm180, %v401, 0
    %v437 = vsel %vm180, %v402, 0
    %v440 = vsel %vm305, %v429, 0
    %v443 = vsel %vm305, %v430, 0
    %445 = vmatprep.subr.bf16.mxu0 %v428
    %446 = vmatpush1.bf16.msra.mxu0 %v427
    %447 = vmatprep.subr.bf16.mxu0 %v443
    %448 = vmatpush1.bf16.msra.mxu0 %v440
    %449 = vmatprep.subr.bf16.mxu0 0
    %450 = vmatpush1.bf16.msra.mxu0 0
    %451 = vmatprep.subr.bf16.mxu0 0
    %452 = vmatpush1.bf16.msra.mxu0 0
    %453 = vmatprep.subr.bf16.mxu0 0
    %454 = vmatpush1.bf16.msra.mxu0 0
    %455 = vmatprep.subr.bf16.mxu0 0
    %456 = vmatpush1.bf16.msra.mxu0 0
    %457 = vmatprep.subr.bf16.mxu0 0
    %458 = vmatpush1.bf16.msra.mxu0 0
    %459 = vmatprep.subr.bf16.mxu0 0
    %460 = vmatpush1.bf16.msra.mxu0 0
    %461 = vmatprep.subr.bf16.mxu0 0
    %462 = vmatpush1.bf16.msra.mxu0 0
    %463 = vmatprep.subr.bf16.mxu0 0
    %464 = vmatpush1.bf16.msra.mxu0 0
    %465 = vmatprep.subr.bf16.mxu0 0
    %466 = vmatpush1.bf16.msra.mxu0 0
    %467 = vmatprep.subr.bf16.mxu0 0
    %468 = vmatpush1.bf16.msra.mxu0 0
    %469 = vmatprep.subr.bf16.mxu0 0
    %470 = vmatpush1.bf16.msra.mxu0 0
    %471 = vmatprep.subr.bf16.mxu0 0
    %472 = vmatpush1.bf16.msra.mxu0 0
    %473 = vmatprep.subr.bf16.mxu0 0
    %474 = vmatpush1.bf16.msra.mxu0 0
    %475 = vmatprep.subr.bf16.mxu0 0
    %476 = vmatpush1.bf16.msra.mxu0 0
    %477 = vmatprep.mubr.bf16.mxu0 0
    %478 = vmatmul.mubr.bf16.gmra.mrb[0].mxu0 %v434
    %v479 = vpop.f32.mrb[0].mxu0
    %v480 = vadd.f32 %v411, %v479
    %v481 = vpop.f32.mrb[0].mxu0
    %v482 = vadd.f32 %v415, %v481
    %v483 = vpop.f32.mrb[0].mxu0
    %v484 = vadd.f32 %v411, %v483
    %v485 = vpop.f32.mrb[0].mxu0
    %v486 = vadd.f32 %v415, %v485
    %487 = vmatprep.mubr.bf16.mxu0 0
    %488 = vmatmul.mubr.bf16.gmra.mrb[0].mxu0 %v437
    %v489 = vpop.f32.mrb[0].mxu0
    %v490 = vadd.f32 %v411, %v489
    %v491 = vpop.f32.mrb[0].mxu0
    %v492 = vadd.f32 %v415, %v491
    %v493 = vpop.f32.mrb[0].mxu0
    %v494 = vpop.f32.mrb[0].mxu0
    %495 = vdwg.mxu0
    %v496 = vpack.c.bf16 %v484, %v480
    %v497 = vpack.c.bf16 %v486, %v482
    %v498 = vpack.c.bf16 %v490, %v490
    %v499 = vpack.c.bf16 %v492, %v492
    %v504 = vunpack.c.l.b16 %v496
    %v505 = vunpack.c.l.b16 %v497
    %v506 = vunpack.c.h.b16 %v496
    %v507 = vunpack.c.h.b16 %v497
    %v508 = vunpack.c.l.b16 %v498
    %v509 = vunpack.c.l.b16 %v499
    %v510 = vpack.c.b16 %v505, %v504
    %v511 = vpack.c.b16 %v507, %v506
    %v512 = vpack.c.b16 %v509, %v508
    %vm516 = vcmask 588804
    %vm517 = vmor %vm516, %vm190
    %518 = vst.msk [vmem:[#allocation7] sm:$0xff] %vm517, %v510
    %519 = vst.msk [vmem:[#allocation7 + $0x8] sm:$0xff] %vm517, %v511
    %520 = vst.msk [vmem:[#allocation7 + $0x10] sm:$0xff] %vm517, %v512
    // Predicated region
    $region46: #{tpu_custom_call.1} parent=1 // pred_check
      _
    $region47: #{tpu_custom_call.1} parent=1 // pred_check_branch
      %522 = sbr.rel (0) target = $region49
    $region48: #{tpu_custom_call.1} parent=1 // pred_region
      %s524 = ssub.s32 384, 384
      %525 = vsyncadd [#allocation4], %s524
      %s526 = sshll.u32 [#allocation7], 4
      %s527 = int_to_ptr.vmem [resolvable:$true] %s526
      %532 = dma.vmem_to_hbm [thread:$0]  %s527, 384, %s9, [#allocation4], 128, 128, 8
    $region49: #{tpu_custom_call.1} parent=1 // pred_fallthru
      _
    // Predicated region
    $region50: #{tpu_custom_call.1} parent=1 // pred_check
      _
    $region51: #{tpu_custom_call.1} parent=1 // pred_check_branch
      %534 = sbr.rel (0) target = $region53
    $region52: #{tpu_custom_call.1} parent=1 // pred_region
      %535 = dma.done [#allocation4], 384
    $region53: #{tpu_custom_call.1} parent=1 // pred_fallthru
      _
    %536 = vsyncpa [#allocation3], 1
    %537 = vsyncpa [#allocation6], 1
    %538 = vsyncpa [#allocation4], 1

</llo_original>
